<compile_context>
chip_gen: v6e
topology: v6e:2x2x1
jax: 0.10.0
libtpu: 0.0.40
codegen_flags: <defaults>
</compile_context>

<pallas_src>
import functools

import jax
import jax.numpy as jnp
from jax import lax
from jax.experimental import pallas as pl
from jax.experimental.pallas import tpu as pltpu

NEG_INF = -1.0e30  # "log zero" sentinel (avoids -inf NaN issues in logsumexp)

_ATT_BLOCK_BUDGET = 6 * 1024 * 1024    # ~6 MiB logits block (~12 MiB double-buffered)
_CTC_Y_BLOCK_BUDGET = 4 * 1024 * 1024  # ~4 MiB y block (~8 MiB double-buffered)


# --------------------------------------------------------------------------
# Label-smoothing attention loss kernel (tiled, accumulating partial sums)
#   per row r: loss_r = -((conf - so) * logit[r,tgt_r] + so * rowsum_r),
#              so = smoothing / (V - 1);  loss_r = 0 if tgt_r == ignore_index
#   mean over all rows (ignored rows still count in the denominator, like torch.mean)
# --------------------------------------------------------------------------
def _att_loss_kernel(logit_ref, tgt_ref, out_ref, *, confidence, smooth_other,
                     ignore_index):
    j = pl.program_id(1)                                      # vocab-tile index
    logits = logit_ref[...].astype(jnp.float32)               # (TR, TV)
    tgt = tgt_ref[...]                                        # (TR, 1) int32
    tr, tv = logits.shape

    col = jax.lax.broadcasted_iota(jnp.int32, (tr, tv), 1) + j * tv
    # select-based target gather (no bool->f32 cast, no extra multiply)
    tgt_logit = jnp.sum(jnp.where(col == tgt, logits, 0.0), axis=-1,
                        keepdims=True)                        # (TR, 1)
    rowsum = jnp.sum(logits, axis=-1, keepdims=True)          # (TR, 1)
    per_row = -((confidence - smooth_other) * tgt_logit + smooth_other * rowsum)
    per_row = jnp.where(tgt == ignore_index, 0.0, per_row)
    partial = jnp.sum(per_row)

    @pl.when(j == 0)
    def _():
        out_ref[...] = jnp.zeros_like(out_ref)
    out_ref[...] += partial                                   # scalar bcast into (1,1,128)


def label_smoothing_loss(logits, targets, *, vocab_size, ignore_index, smoothing,
                         row_block=None, v_block=None):
    # NOTE: do NOT pre-cast logits to f32 here — the kernel casts in VMEM, so a
    # bf16 caller streams half the HBM bytes (matters most on v5e).
    v = logits.shape[-1]
    logits2d = logits.reshape(-1, v)
    n = logits2d.shape[0]
    tgt2d = targets.reshape(-1, 1).astype(jnp.int32)
    itemsize = jnp.dtype(logits2d.dtype).itemsize

    # ---- vocab tile: full V unless even an 8-row full-V block blows the budget ----
    if v_block is not None:
        tv = v_block
    else:
        tv = v
        if 8 * v * itemsize > _ATT_BLOCK_BUDGET:
            tv = None
            for cand in (8192, 4096, 2048, 1024, 512, 256, 128):
                if v % cand == 0:
                    tv = cand
                    break
            if tv is None:
                # pad V with zero columns to a 128-multiple tile (safe: padded
                # columns add 0 to rowsum and can never equal a target id)
                tv = 2048
                v_new = tv * pl.cdiv(v, tv)
                logits2d = jnp.pad(logits2d, ((0, 0), (0, v_new - v)))
    v_eff = logits2d.shape[-1]
    num_v = v_eff // tv

    # ---- row tile: multiple of 8, logits block close to the VMEM budget ----
    if row_block is not None:
        tr = row_block
    else:
        tr = max(8, min(1024, (_ATT_BLOCK_BUDGET // (tv * itemsize)) // 8 * 8))
    tr = min(tr, max(8, pl.cdiv(n, 8) * 8))

    n_pad = tr * pl.cdiv(n, tr)
    if n_pad != n:
        logits2d = jnp.pad(logits2d, ((0, n_pad - n), (0, 0)))
        tgt2d = jnp.pad(tgt2d, ((0, n_pad - n), (0, 0)),
                        constant_values=ignore_index)
    num_r = n_pad // tr

    vmem_need = 2 * (tr * tv * itemsize + tr * 4) + 2 * 128 * 4
    vmem_limit = int(min(48 * 1024 * 1024, max(32 * 1024 * 1024, 2 * vmem_need)))

    kernel = functools.partial(
        _att_loss_kernel,
        confidence=1.0 - smoothing,
        smooth_other=smoothing / (vocab_size - 1),
        ignore_index=ignore_index,
    )
    partials = pl.pallas_call(
        kernel,
        out_shape=jax.ShapeDtypeStruct((num_r, 1, 128), jnp.float32),
        grid_spec=pltpu.PrefetchScalarGridSpec(
            num_scalar_prefetch=0,
            grid=(num_r, num_v),
            in_specs=[pl.BlockSpec((tr, tv), lambda i, j: (i, j)),
                      pl.BlockSpec((tr, 1), lambda i, j: (i, 0))],
            out_specs=pl.BlockSpec((1, 1, 128), lambda i, j: (i, 0, 0)),
        ),
        compiler_params=pltpu.CompilerParams(
            dimension_semantics=("parallel", "arbitrary"),
            vmem_limit_bytes=vmem_limit),
    )(logits2d, tgt2d)

    # mean over ALL rows (incl. ignore_index rows), matching torch.mean
    return jnp.sum(partials[:, 0, 0]) / n


# --------------------------------------------------------------------------
# CTC forward (alpha recursion) kernel, V-independent.
# Grid = (batch blocks "parallel", time blocks "arbitrary"); alpha in VMEM scratch.
#   y[t, b, s]  = log_prob[b, t, ext_label[b, s]]  (gathered outside the kernel)
#   alpha_t[s]  = logsumexp(alpha[s], alpha[s-1]+shift1, alpha[s-2]+allow2) + y[t,s]
#   final       = -logsumexp(alpha_T at the two terminal positions)
# --------------------------------------------------------------------------
def _ctc_kernel(y_ref, allow2_ref, init_ref, final_ref, shift1_ref,
                out_ref, alpha_ref, *, tt, total_t, num_tb):
    tb = pl.program_id(1)
    last_tb = num_tb - 1
    first_steps = min(tt, total_t)                  # valid steps in time block 0
    last_steps = total_t - last_tb * tt             # valid steps in the last block

    allow2_add = allow2_ref[...]                    # (BB, Sp) 0 / NEG_INF masks
    # s==0 roll-wrap mask, broadcast ONCE (hoisted out of the unrolled loop)
    shift1_add = jnp.broadcast_to(shift1_ref[...], allow2_add.shape)

    def recurrence(alpha, yt):
        a1 = pltpu.roll(alpha, shift=1, axis=1) + shift1_add   # alpha[s-1]
        a2 = pltpu.roll(alpha, shift=2, axis=1) + allow2_add   # alpha[s-2]
        # 3-way logsumexp with 2 exps + 1 log: the max term's exp(0)==1 is the
        # constant; the two non-max values are min(hi,a2) and min(alpha,a1).
        hi = jnp.maximum(alpha, a1)
        lo = jnp.minimum(alpha, a1)
        m = jnp.maximum(hi, a2)
        o1 = jnp.minimum(hi, a2)
        lse = m + jnp.log(1.0 + jnp.exp(o1 - m) + jnp.exp(lo - m))
        return lse + yt

    def step(i, alpha):                             # hot loop: no per-step selects
        return recurrence(alpha, y_ref[i])

    def finalize():
        masked = alpha_ref[...] + final_ref[...]    # (BB, Sp)
        mmax = jnp.max(masked, axis=-1, keepdims=True)
        ll = mmax + jnp.log(jnp.sum(jnp.exp(masked - mmax), axis=-1,
                                    keepdims=True))
        out_ref[...] = jnp.broadcast_to(-ll, out_ref.shape)    # lane-dense store

    if num_tb == 1:
        # Single time block: init at t==0, run the remaining valid steps, finalize.
        alpha = init_ref[...] + y_ref[0]
        alpha_ref[...] = lax.fori_loop(1, first_steps, step, alpha, unroll=True)
        finalize()
    else:
        @pl.when(tb == 0)
        def _():
            alpha = init_ref[...] + y_ref[0]
            alpha_ref[...] = lax.fori_loop(1, tt, step, alpha, unroll=True)

        @pl.when(jnp.logical_and(tb != 0, tb != last_tb))
        def _():
            alpha_ref[...] = lax.fori_loop(0, tt, step, alpha_ref[...],
                                           unroll=True)

        @pl.when(tb == last_tb)
        def _():
            # last block runs only its valid steps (no per-step padding mask)
            alpha_ref[...] = lax.fori_loop(0, last_steps, step, alpha_ref[...],
                                           unroll=True)
            finalize()


def ctc_loss(ctc_out, targets, target_lengths, *, blank, time_block=None,
             batch_block=None):
    # ctc_out: (B, T, V) — consumed as log-probabilities (the PyTorch module
    # feeds the raw tensor straight into nn.CTCLoss), input_lengths == T for all,
    # zero_infinity=True, reduction='mean'.
    b, t_len, _v = ctc_out.shape
    s = targets.shape[1]
    s_ext = 2 * s + 1
    s_pad = 128 * pl.cdiv(s_ext, 128)          # lane-padded extended-label length

    # ---- batch tile: wide enough to hide the serial roll->max->exp->log chain,
    # but keep >=2 batch blocks when batch allows (v7x megacore split) ----
    if batch_block is None:
        bb = min(64, max(8, 8 * pl.cdiv(pl.cdiv(b, 2), 8)))
    else:
        bb = batch_block
    b_pad = bb * pl.cdiv(b, bb)

    # ---- time tile: 32-128 steps per grid step (amortize ~0.35us overhead);
    # prefer a divisor of T, keep the y block within the VMEM budget ----
    if time_block is None:
        tt_cap = max(8, _CTC_Y_BLOCK_BUDGET // (bb * s_pad * 4))
        tt = 0
        for cand in (128, 96, 64, 48, 32):
            if cand <= tt_cap and t_len % cand == 0:
                tt = cand
                break
        if tt == 0:
            tt = max(8, (min(tt_cap, 64, 8 * pl.cdiv(t_len, 8)) // 8) * 8)
    else:
        tt = time_block
    t_pad = tt * pl.cdiv(t_len, tt)
    num_tb = t_pad // tt

    tgt = targets.astype(jnp.int32)
    tl = target_lengths.astype(jnp.int32)

    # blank-interleaved extended label sequence, lane-padded with blanks
    ext = jnp.full((b, s_ext), blank, dtype=jnp.int32)
    ext = ext.at[:, 1::2].set(tgt)
    ext = jnp.pad(ext, ((0, 0), (0, s_pad - s_ext)), constant_values=blank)

    # Gather label log-probs once in the NATIVE dtype (tiny (B, T, Sp) result is
    # cast afterwards) so the DP kernel is independent of V and no (B,T,V) f32
    # copy is ever materialized in HBM.
    y = jax.vmap(lambda lp_b, ext_b: jnp.take(lp_b, ext_b, axis=-1))(ctc_out, ext)
    y = jnp.transpose(y, (1, 0, 2)).astype(jnp.float32)        # (T, B, Sp)
    if t_pad != t_len or b_pad != b:
        y = jnp.pad(y, ((0, t_pad - t_len), (0, b_pad - b), (0, 0)))

    s_idx = jnp.arange(s_pad, dtype=jnp.int32)[None, :]
    ext_m2 = jnp.pad(ext, ((0, 0), (2, 0)), constant_values=blank)[:, :s_pad]
    allow2 = (ext != blank) & (ext != ext_m2) & (s_idx >= 2)
    allow2_add = jnp.where(allow2, 0.0, NEG_INF).astype(jnp.float32)

    tl2 = tl[:, None]
    init_add = jnp.where((s_idx == 0) | ((s_idx == 1) & (tl2 >= 1)),
                         0.0, NEG_INF).astype(jnp.float32)
    last = 2 * tl2
    final_add = jnp.where((s_idx == last) | ((s_idx == last - 1) & (tl2 >= 1)),
                          0.0, NEG_INF).astype(jnp.float32)
    shift1_add = jnp.where(s_idx >= 1, 0.0, NEG_INF).astype(jnp.float32)  # (1, Sp)

    if b_pad != b:
        pad = ((0, b_pad - b), (0, 0))
        allow2_add = jnp.pad(allow2_add, pad)
        init_add = jnp.pad(init_add, pad)
        final_add = jnp.pad(final_add, pad)

    kernel = functools.partial(_ctc_kernel, tt=tt, total_t=t_len, num_tb=num_tb)
    out = pl.pallas_call(
        kernel,
        out_shape=jax.ShapeDtypeStruct((b_pad, 128), jnp.float32),
        grid_spec=pltpu.PrefetchScalarGridSpec(
            num_scalar_prefetch=0,
            grid=(b_pad // bb, num_tb),
            in_specs=[
                pl.BlockSpec((tt, bb, s_pad), lambda i, t: (t, i, 0)),  # gathered y
                pl.BlockSpec((bb, s_pad), lambda i, t: (i, 0)),         # allow2 mask
                pl.BlockSpec((bb, s_pad), lambda i, t: (i, 0)),         # init mask
                pl.BlockSpec((bb, s_pad), lambda i, t: (i, 0)),         # final mask
                pl.BlockSpec((1, s_pad), lambda i, t: (0, 0)),          # s==0 wrap mask
            ],
            out_specs=pl.BlockSpec((bb, 128), lambda i, t: (i, 0)),     # lane-dense
            scratch_shapes=[pltpu.VMEM((bb, s_pad), jnp.float32)],
        ),
        compiler_params=pltpu.CompilerParams(
            dimension_semantics=("parallel", "arbitrary")),
    )(y, allow2_add, init_add, final_add, shift1_add)

    nll = out[:b, 0]
    nll = jnp.where(nll > 1e29, 0.0, nll)                 # zero_infinity=True
    # reduction='mean': divide by clamp(target_length, 1), then mean over batch
    tl_f = jnp.maximum(target_lengths.astype(jnp.float32), 1.0)
    return jnp.mean(nll / tl_f)


# --------------------------------------------------------------------------
# CTC_Attention_Loss.forward
# --------------------------------------------------------------------------
def ctc_attention_loss(outputs, targets, target_lengths, *, alpha, vocab_size,
                       pad_id, unk_id, label_smoothing):
    att_out, ctc_out = outputs
    att_l = label_smoothing_loss(att_out, targets, vocab_size=vocab_size,
                                 ignore_index=pad_id, smoothing=label_smoothing)
    # TODO(synk): ctc_out is consumed as log-probabilities, exactly like the
    # reference (which feeds the raw tensor straight into nn.CTCLoss).
    ctc_l = ctc_loss(ctc_out, targets, target_lengths, blank=unk_id)
    return alpha * att_l + (1.0 - alpha) * ctc_l


if __name__ == "__main__":
    # Small shapes consistent with the module: B batch, S attention/target len,
    # L CTC time steps, V vocab size.
    B, S, L, V = 2, 8, 16, 16
    unk_id, pad_id = 0, 1           # vocab.unk_id (CTC blank), vocab.pad_id
    alpha, smoothing = 0.8, 0.1     # config.model.alpha, config.model.label_smoothing

    key = jax.random.PRNGKey(0)
    k1, k2, k3 = jax.random.split(key, 3)
    att_out = jax.nn.log_softmax(jax.random.normal(k1, (B, S, V), jnp.float32), axis=-1)
    ctc_out = jax.nn.log_softmax(jax.random.normal(k2, (B, L, V), jnp.float32), axis=-1)

    target_lengths = jnp.array([S, S - 2], dtype=jnp.int32)
    targets = jax.random.randint(k3, (B, S), 2, V, dtype=jnp.int32)
    pos = jnp.arange(S, dtype=jnp.int32)[None, :]
    targets = jnp.where(pos < target_lengths[:, None], targets, pad_id)

    loss = ctc_attention_loss((att_out, ctc_out), targets, target_lengths,
                              alpha=alpha, vocab_size=V, pad_id=pad_id,
                              unk_id=unk_id, label_smoothing=smoothing)
    loss = jax.block_until_ready(loss)
    assert bool(jnp.isfinite(loss)), "loss is not finite"
    print("KERNEL_OK")
</pallas_src>

<mosaic_0001>
module attributes {stable_mosaic.version = 11 : i64} {
  func.func @_att_loss_kernel(%arg0: i32, %arg1: i32, %arg2: memref<16x16xf32, #tpu.memory_space<vmem>>, %arg3: memref<16x1xi32, #tpu.memory_space<vmem>>, %arg4: memref<1x1x128xf32, #tpu.memory_space<vmem>>) attributes {dimension_semantics = [#tpu.dimension_semantics<parallel>, #tpu.dimension_semantics<arbitrary>], iteration_bounds = array<i64: 1, 1>, scalar_prefetch = 0 : i64, scratch_operands = 0 : i64, tpu.core_type = #tpu.core_type<tc>, window_params = [{transform_indices = @transform_0, window_bounds = array<i64: 16, 16>}, {transform_indices = @transform_1, window_bounds = array<i64: 16, 1>}, {transform_indices = @transform_2, window_bounds = array<i64: 1, 1, 128>}]} {
    %c0 = arith.constant 0 : index
    %c0_0 = arith.constant 0 : index
    %0 = vector.load %arg2[%c0, %c0_0] : memref<16x16xf32, #tpu.memory_space<vmem>>, vector<16x16xf32>
    %c0_1 = arith.constant 0 : index
    %c0_2 = arith.constant 0 : index
    %1 = vector.load %arg3[%c0_1, %c0_2] : memref<16x1xi32, #tpu.memory_space<vmem>>, vector<16x1xi32>
    %2 = tpu.iota {dimensions = array<i32: 1>} : vector<16x16xi32>
    %c16_i32 = arith.constant 16 : i32
    %3 = arith.muli %arg1, %c16_i32 : i32
    %4 = vector.broadcast %3 : i32 to vector<16x16xi32>
    %5 = arith.addi %2, %4 : vector<16x16xi32>
    %6 = vector.broadcast %1 : vector<16x1xi32> to vector<16x16xi32>
    %7 = arith.cmpi eq, %5, %6 : vector<16x16xi32>
    %cst = arith.constant 0.000000e+00 : f32
    %8 = vector.broadcast %cst : f32 to vector<16x16xf32>
    %9 = arith.select %7, %0, %8 : vector<16x16xi1>, vector<16x16xf32>
    %cst_3 = arith.constant dense<0.000000e+00> : vector<16xf32>
    %10 = vector.multi_reduction <add>, %9, %cst_3 [1] : vector<16x16xf32> to vector<16xf32>
    %11 = vector.shape_cast %10 : vector<16xf32> to vector<16x1xf32>
    %cst_4 = arith.constant dense<0.000000e+00> : vector<16xf32>
    %12 = vector.multi_reduction <add>, %0, %cst_4 [1] : vector<16x16xf32> to vector<16xf32>
    %13 = vector.shape_cast %12 : vector<16xf32> to vector<16x1xf32>
    %cst_5 = arith.constant 0.893333315 : f32
    %14 = vector.broadcast %cst_5 : f32 to vector<16x1xf32>
    %15 = arith.mulf %14, %11 : vector<16x1xf32>
    %cst_6 = arith.constant 0.00666666683 : f32
    %16 = vector.broadcast %cst_6 : f32 to vector<16x1xf32>
    %17 = arith.mulf %16, %13 : vector<16x1xf32>
    %18 = arith.addf %15, %17 : vector<16x1xf32>
    %cst_7 = arith.constant 0.000000e+00 : f32
    %19 = vector.broadcast %cst_7 : f32 to vector<16x1xf32>
    %20 = arith.subf %19, %18 : vector<16x1xf32>
    %c1_i32 = arith.constant 1 : i32
    %21 = vector.broadcast %c1_i32 : i32 to vector<16x1xi32>
    %22 = arith.cmpi eq, %1, %21 : vector<16x1xi32>
    %cst_8 = arith.constant 0.000000e+00 : f32
    %23 = vector.broadcast %cst_8 : f32 to vector<16x1xf32>
    %24 = arith.select %22, %23, %20 : vector<16x1xi1>, vector<16x1xf32>
    %25 = vector.shape_cast %24 : vector<16x1xf32> to vector<1x16x1xf32>
    %cst_9 = arith.constant dense<0.000000e+00> : vector<1xf32>
    %26 = vector.multi_reduction <add>, %25, %cst_9 [1, 2] : vector<1x16x1xf32> to vector<1xf32>
    %27 = vector.shape_cast %26 : vector<1xf32> to vector<1x1x1xf32>
    %28 = vector.extract %27[0, 0, 0] : f32 from vector<1x1x1xf32>
    %c0_i32 = arith.constant 0 : i32
    %29 = arith.cmpi eq, %arg1, %c0_i32 : i32
    %30 = arith.extui %29 : i1 to i32
    %c0_i32_10 = arith.constant 0 : i32
    %31 = arith.cmpi ne, %30, %c0_i32_10 : i32
    scf.if %31 {
      %cst_17 = arith.constant 0.000000e+00 : f32
      %36 = vector.broadcast %cst_17 : f32 to vector<1x1x128xf32>
      %c0_18 = arith.constant 0 : index
      %c0_19 = arith.constant 0 : index
      %c0_20 = arith.constant 0 : index
      %37 = vector.load %arg4[%c0_18, %c0_19, %c0_20] : memref<1x1x128xf32, #tpu.memory_space<vmem>>, vector<1x1x128xf32>
      tpu.vector_store %arg4[%c0_18, %c0_19, %c0_20], %36 {strides = array<i32>} : memref<1x1x128xf32, #tpu.memory_space<vmem>>, vector<1x1x128xf32>,
    } else {
    }
    %c0_11 = arith.constant 0 : index
    %c0_12 = arith.constant 0 : index
    %c0_13 = arith.constant 0 : index
    %32 = vector.load %arg4[%c0_11, %c0_12, %c0_13] : memref<1x1x128xf32, #tpu.memory_space<vmem>>, vector<1x1x128xf32>
    %33 = vector.broadcast %28 : f32 to vector<1x1x128xf32>
    %34 = arith.addf %32, %33 : vector<1x1x128xf32>
    %c0_14 = arith.constant 0 : index
    %c0_15 = arith.constant 0 : index
    %c0_16 = arith.constant 0 : index
    %35 = vector.load %arg4[%c0_14, %c0_15, %c0_16] : memref<1x1x128xf32, #tpu.memory_space<vmem>>, vector<1x1x128xf32>
    tpu.vector_store %arg4[%c0_14, %c0_15, %c0_16], %34 {strides = array<i32>} : memref<1x1x128xf32, #tpu.memory_space<vmem>>, vector<1x1x128xf32>,
    return
  }
  func.func @transform_0(%arg0: i32, %arg1: i32) -> (i32, i32) {
    %c0_i32 = arith.constant 0 : i32
    return %arg0, %arg1 : i32, i32
  }
  func.func @transform_1(%arg0: i32, %arg1: i32) -> (i32, i32) {
    %c0_i32 = arith.constant 0 : i32
    %c0_i32_0 = arith.constant 0 : i32
    return %arg0, %c0_i32 : i32, i32
  }
  func.func @transform_2(%arg0: i32, %arg1: i32) -> (i32, i32, i32) {
    %c0_i32 = arith.constant 0 : i32
    %c0_i32_0 = arith.constant 0 : i32
    %c0_i32_1 = arith.constant 0 : i32
    return %arg0, %c0_i32, %c0_i32_0 : i32, i32, i32
  }
}

</mosaic_0001>

<llo_original>
// kernel: tpu_custom_call.1
$region0: #{tpu_custom_call.1}
  #allocation0 [shape = 'u32[]', space=smem, size = 0x4, offset = 0x4, fixed_abs, tag = 'smem constant byte address 0x4 - core index']
  #allocation1 [shape = 'u32[144,128]{1,0:T(1,128)}', space=vmem, size = 0x12000, scoped, tag = 'internal scratch']
  %s0 = inlined_call_operand.vmem [shape: f32[16,16], index: 0, kind: input, shape index: {}]
  %s1 = inlined_call_operand.vmem [shape: s32[16,1], index: 1, kind: input, shape index: {}]
  %s2 = inlined_call_operand.hbm [shape: f32[1,1,128], index: 2, kind: output, shape index: {}]
  %s3 = sld [smem:[#allocation0]]
  $region22: #{tpu_custom_call.1} parent=0
    _
  %s5 = ssub.s32 1, %s3
  %s6 = scalar_select 0, %s5, %s3
  $region1: #{tpu_custom_call.1} parent=0
    #allocation2 [shape = 'u8[512]{0}', space=vmem, size = 0x400, scoped, tag = 'output window, operand 0, single buffered']
    #allocation3 [shape = 's32[1]{0}', space=sflag, size = 0x4, scoped, tag = 'scoped memory for tpu_custom_call.1']
    %7 = vsyncpa [#allocation3], 0
    // Predicated region
    $region2: #{tpu_custom_call.1} parent=1 // pred_check
      _
    $region3: #{tpu_custom_call.1} parent=1 // pred_check_branch
      %9 = sbr.rel (0) target = $region5
    $region4: #{tpu_custom_call.1} parent=1 // pred_region
      _
    $region5: #{tpu_custom_call.1} parent=1 // pred_fallthru
      _
    // Predicated region
    $region6: #{tpu_custom_call.1} parent=1 // pred_check
      _
    $region7: #{tpu_custom_call.1} parent=1 // pred_check_branch
      %11 = sbr.rel (0) target = $region9
    $region8: #{tpu_custom_call.1} parent=1 // pred_region
      _
    $region9: #{tpu_custom_call.1} parent=1 // pred_fallthru
      _
    %v12 = vld [vmem:[%s0] sm:$0xff]
    %v13 = vld [vmem:[%s0 + $0x8] sm:$0xff]
    %v14 = vld [vmem:[%s1] sm:$0xff]
    %v15 = vld [vmem:[%s1 + $0x8] sm:$0xff]
    %v16 = vlaneseq
    %v17 = vand.u32 %v16, 127
    %s18 = smul.u32 0, 16
    %v19 = vstv %s18
    %v20 = vadd.s32 %v17, %v19
    %21 = vset.pattern.permute.xlu0 0
    %22 = vperm.xlu0 %21, %v14
    %v23 = vpop.permute.xlu0 %22
    %24 = vset.pattern.permute.xlu0 0
    %25 = vperm.xlu0 %24, %v15
    %v26 = vpop.permute.xlu0 %25
    %vm27 = vcmp.eq.s32.totalorder %v20, %v23
    %vm28 = vcmp.eq.s32.totalorder %v20, %v26
    %v29 = vsel %vm27, %v12, 0.0
    %v30 = vsel %vm28, %v13, 0.0
    %vm31 = vcmask 130048
    %v32 = vsel %vm31, %v29, 0.0
    %33 = vadd.xlane.f32.xlu0 %v32
    %v34 = vpop.xlane.xlu0 %33
    %v35 = vsel %vm31, %v30, 0.0
    %36 = vadd.xlane.f32.xlu0 %v35
    %v37 = vpop.xlane.xlu0 %36
    %v38 = vsel %vm31, %v12, 0.0
    %39 = vadd.xlane.f32.xlu0 %v38
    %v40 = vpop.xlane.xlu0 %39
    %v41 = vsel %vm31, %v13, 0.0
    %42 = vadd.xlane.f32.xlu0 %v41
    %v43 = vpop.xlane.xlu0 %42
    %v44 = vmul.f32 %v34, 0.8933333
    %v45 = vmul.f32 %v37, 0.8933333
    %v46 = vmul.f32 %v40, 0.006666667
    %v47 = vmul.f32 %v43, 0.006666667
    %v48 = vadd.f32 %v44, %v46
    %v49 = vadd.f32 %v45, %v47
    %v50 = vsub.f32 0.0, %v48
    %v51 = vsub.f32 0.0, %v49
    %vm52 = vcmp.eq.s32.totalorder %v14, 1
    %vm53 = vcmp.eq.s32.totalorder %v15, 1
    %v54 = vsel %vm52, 0.0, %v50
    %v55 = vsel %vm53, 0.0, %v51
    %vm56 = vcmask 7168
    %v57 = vsel %vm56, %v54, 0.0
    %v58 = vsel %vm56, %v55, 0.0
    %v59 = vadd.f32 %v57, %v58
    %60 = vadd.xlane.f32.xlu0 %v59
    %v61 = vpop.xlane.xlu0 %60
    %v62 = vrot.slane %v61, 4
    %v63 = vadd.f32 %v61, %v62
    %v64 = vrot.slane %v63, 2
    %v65 = vadd.f32 %v63, %v64
    %v66 = vrot.slane %v65, 1
    %v67 = vadd.f32 %v65, %v66
    %s68 = vtos %v67
    %p69 = scmp.eq.s32.totalorder 0, 0
    // Predicated region
    $region10: #{tpu_custom_call.1} parent=1 // pred_check
      %p70 = pneg %p69
    $region11: #{tpu_custom_call.1} parent=1 // pred_check_branch
      %72 = sbr.rel (%p70) target = $region13
    $region12: #{tpu_custom_call.1} parent=1 // pred_region
      %73 = vst [vmem:[#allocation2] sm:$0x1] 0.0
    $region13: #{tpu_custom_call.1} parent=1 // pred_fallthru
      _
    %v74 = vld [vmem:[#allocation2] sm:$0x1]
    %v75 = vstv %s68
    %v76 = vadd.f32 %v74, %v75
    %77 = vst [vmem:[#allocation2] sm:$0x1] %v76
    // Predicated region
    $region14: #{tpu_custom_call.1} parent=1 // pred_check
      _
    $region15: #{tpu_custom_call.1} parent=1 // pred_check_branch
      %79 = sbr.rel (0) target = $region17
    $region16: #{tpu_custom_call.1} parent=1 // pred_region
      %s81 = ssub.s32 16, 16
      %82 = vsyncadd [#allocation3], %s81
      %s84 = sshll.u32 [#allocation2], 4
      %s85 = int_to_ptr.vmem [resolvable:$true] %s84
      %87 = dma.vmem_to_hbm [thread:$0]  %s85, 16, %s2, [#allocation3]
    $region17: #{tpu_custom_call.1} parent=1 // pred_fallthru
      _
    // Predicated region
    $region18: #{tpu_custom_call.1} parent=1 // pred_check
      _
    $region19: #{tpu_custom_call.1} parent=1 // pred_check_branch
      %89 = sbr.rel (0) target = $region21
    $region20: #{tpu_custom_call.1} parent=1 // pred_region
      %90 = dma.done [#allocation3], 16
    $region21: #{tpu_custom_call.1} parent=1 // pred_fallthru
      _
    %91 = vsyncpa [#allocation3], 1

</llo_original>
